<compile_context>
chip_gen: v5e
topology: v5e:2x2
jax: 0.10.0
libtpu: 0.0.40
codegen_flags: <defaults>
</compile_context>

<pallas_src>
import jax
import jax.numpy as jnp
from jax.experimental import pallas as pl
from jax.experimental.pallas import tpu as pltpu


def _round_up(x, m):
    return (x + m - 1) // m * m


def critic_kernel(state_ref, action_ref,
                  w1_ref, b1_ref,
                  w2a_ref, w2b_ref, b2_ref,
                  w3_ref, b3_ref,
                  w4_ref, b4_ref,
                  out_ref):
    cdt = w1_ref.dtype  # MXU operand dtype (f32 or bf16); accumulation is f32.

    # fc1 + ReLU
    x1 = jnp.dot(state_ref[...].astype(cdt), w1_ref[...],
                 preferred_element_type=jnp.float32) + b1_ref[...]
    x1 = jnp.maximum(x1, 0.0)

    # fc2 on cat([x1, action], dim=1) + ReLU
    #   cat(x1, a) @ W2 == x1 @ W2[:H1] + a * W2[H1:]   (scalar action)
    h2 = (jnp.dot(x1.astype(cdt), w2a_ref[...],
                  preferred_element_type=jnp.float32)
          + action_ref[...] * w2b_ref[...]
          + b2_ref[...])
    h2 = jnp.maximum(h2, 0.0)

    # fc3 + ReLU
    h3 = jnp.dot(h2.astype(cdt), w3_ref[...],
                 preferred_element_type=jnp.float32) + b3_ref[...]
    h3 = jnp.maximum(h3, 0.0)

    # fc4 (no activation): output width is 1, so use VPU multiply + lane
    # reduction (XLU) instead of a width-1 MXU matmul.
    out_ref[...] = (jnp.sum(h3 * w4_ref[...], axis=-1, keepdims=True)
                    + b4_ref[...])


def prepare_params(params, compute_dtype=jnp.float32):
    """One-time parameter preparation (call once, reuse every forward):
    transpose torch-style (out,in) weights to (in,out), split W2 to fold the
    concat, zero-pad hidden dims to multiples of 128 lanes, reshape biases to
    (1,H).  Matmul weights are cast to `compute_dtype` (e.g. bf16 on v6e/v7x);
    biases, the action row of W2 and the fc4 row stay f32 (VPU operands)."""
    w1, b1, w2, b2, w3, b3, w4, b4 = params
    H1, D = w1.shape
    H2 = w2.shape[0]
    H3 = w3.shape[0]
    H1p, H2p, H3p = (_round_up(h, 128) for h in (H1, H2, H3))

    def pad2(x, rows, cols):
        return jnp.pad(x, ((0, rows - x.shape[0]), (0, cols - x.shape[1])))

    w1_t = pad2(w1.T, D, H1p).astype(compute_dtype)            # (D,   H1p)
    b1_p = pad2(b1[None, :], 1, H1p)                           # (1,   H1p) f32
    w2_t = w2.T                                                # (H1+1, H2)
    w2a  = pad2(w2_t[:H1, :], H1p, H2p).astype(compute_dtype)  # (H1p, H2p)
    w2b  = pad2(w2_t[H1:, :], 1, H2p)                          # (1,   H2p) f32
    b2_p = pad2(b2[None, :], 1, H2p)                           # (1,   H2p) f32
    w3_t = pad2(w3.T, H2p, H3p).astype(compute_dtype)          # (H2p, H3p)
    b3_p = pad2(b3[None, :], 1, H3p)                           # (1,   H3p) f32
    w4_r = pad2(w4, 1, H3p)                                    # (1,   H3p) f32
    b4_p = b4[None, :]                                         # (1, 1)     f32
    return (w1_t, b1_p, w2a, w2b, b2_p, w3_t, b3_p, w4_r, b4_p)


def ddpg_critic_forward(state, action, prepared, *, block_b=1024):
    """state: (B, D) f32, action: (B, 1) f32 -> (B, 1) f32.

    `prepared` must come from `prepare_params` (weights are NOT re-prepared
    per call).  `block_b` is the batch tile; 1024 keeps the (TB,256) f32
    activations + resident weights comfortably inside v7x's 64 MiB VMEM."""
    B, D = state.shape
    assert action.ndim == 2 and action.shape == (B, 1), (
        "DDPGCritic folds the concat assuming a scalar action: need (B, 1)")

    (w1_t, b1_p, w2a, w2b, b2_p, w3_t, b3_p, w4_r, b4_p) = prepared
    assert w1_t.shape[0] == D, "state feature dim does not match fc1"
    H1p, H2p, H3p = w1_t.shape[1], w2a.shape[1], w3_t.shape[1]

    # Batch tiling: grid over batch rows; weights stay VMEM-resident.
    TB = min(block_b, _round_up(B, 8))
    B_pad = pl.cdiv(B, TB) * TB
    if B_pad != B:
        state = jnp.pad(state, ((0, B_pad - B), (0, 0)))
        action = jnp.pad(action, ((0, B_pad - B), (0, 0)))
    grid = (B_pad // TB,)

    def batch_spec(cols):
        return pl.BlockSpec((TB, cols), lambda i: (i, 0))

    def resident(arr):  # full-array block, same index every step -> no re-DMA
        return pl.BlockSpec(arr.shape, lambda i: (0, 0))

    flops = 2 * B_pad * (D * H1p + H1p * H2p + H2p * H3p + H3p)
    bytes_accessed = int(
        state.size * state.dtype.itemsize
        + action.size * action.dtype.itemsize
        + sum(int(a.size) * a.dtype.itemsize for a in prepared)
        + B_pad * 4)

    out = pl.pallas_call(
        critic_kernel,
        out_shape=jax.ShapeDtypeStruct((B_pad, 1), jnp.float32),
        grid_spec=pltpu.PrefetchScalarGridSpec(
            num_scalar_prefetch=0,
            grid=grid,
            in_specs=[
                batch_spec(D),            # state tile
                batch_spec(1),            # action tile
                resident(w1_t), resident(b1_p),
                resident(w2a), resident(w2b), resident(b2_p),
                resident(w3_t), resident(b3_p),
                resident(w4_r), resident(b4_p),
            ],
            out_specs=batch_spec(1),
        ),
        compiler_params=pltpu.CompilerParams(
            dimension_semantics=("parallel",)),
        cost_estimate=pl.CostEstimate(
            flops=flops, transcendentals=0, bytes_accessed=bytes_accessed),
    )(state, action, *prepared)

    return out[:B] if B_pad != B else out


def init_params(key, input_size):
    """Deterministic torch.nn.Linear-style init (uniform +/- 1/sqrt(fan_in))."""
    h1 = input_size
    h2 = (h1 + 1) * 2
    h3 = h2 * 2
    out = 1

    shapes = [
        ((h1, input_size), (h1,)),   # fc1
        ((h2, h1 + 1), (h2,)),       # fc2
        ((h3, h2), (h3,)),           # fc3
        ((out, h3), (out,)),         # fc4
    ]
    params = []
    for (w_shape, b_shape) in shapes:
        key, kw, kb = jax.random.split(key, 3)
        bound = 1.0 / jnp.sqrt(jnp.float32(w_shape[1]))
        w = jax.random.uniform(kw, w_shape, jnp.float32, -bound, bound)
        b = jax.random.uniform(kb, b_shape, jnp.float32, -bound, bound)
        params += [w, b]
    return tuple(params)


def reference_forward(state, action, params):
    """Pure-JAX reference mirroring the PyTorch forward exactly."""
    w1, b1, w2, b2, w3, b3, w4, b4 = params
    x1 = jnp.maximum(state @ w1.T + b1, 0.0)
    x = jnp.concatenate([x1, action], axis=1)
    x = jnp.maximum(x @ w2.T + b2, 0.0)
    x = jnp.maximum(x @ w3.T + b3, 0.0)
    return x @ w4.T + b4


if __name__ == "__main__":
    B = 8
    OBS_DIM = 32   # input_size = hidden_layer_size = 32 -> h2=66, h3=132

    key = jax.random.PRNGKey(0)
    key, ks, ka = jax.random.split(key, 3)
    state = jax.random.normal(ks, (B, OBS_DIM), jnp.float32)
    action = jax.random.normal(ka, (B, 1), jnp.float32)

    params = init_params(key, OBS_DIM)
    ref = reference_forward(state, action, params)

    # f32 MXU path: numerically faithful to the PyTorch module.
    prepared_f32 = prepare_params(params, compute_dtype=jnp.float32)
    out = jax.block_until_ready(ddpg_critic_forward(state, action, prepared_f32))
    assert out.shape == (B, 1)
    assert jnp.allclose(out, ref, atol=1e-5, rtol=1e-5), (out, ref)

    # bf16 MXU operands (v6e/v7x fast path), f32 accumulation + elementwise.
    prepared_bf16 = prepare_params(params, compute_dtype=jnp.bfloat16)
    out_bf16 = jax.block_until_ready(
        ddpg_critic_forward(state, action, prepared_bf16))
    assert out_bf16.shape == (B, 1)
    assert jnp.allclose(out_bf16, ref, atol=5e-2, rtol=5e-2), (out_bf16, ref)

    print("KERNEL_OK")
</pallas_src>

<mosaic_0001>
module attributes {stable_mosaic.version = 11 : i64} {
  func.func @critic_kernel(%arg0: i32, %arg1: memref<8x32xf32, #tpu.memory_space<vmem>>, %arg2: memref<8x1xf32, #tpu.memory_space<vmem>>, %arg3: memref<32x128xf32, #tpu.memory_space<vmem>>, %arg4: memref<1x128xf32, #tpu.memory_space<vmem>>, %arg5: memref<128x128xf32, #tpu.memory_space<vmem>>, %arg6: memref<1x128xf32, #tpu.memory_space<vmem>>, %arg7: memref<1x128xf32, #tpu.memory_space<vmem>>, %arg8: memref<128x256xf32, #tpu.memory_space<vmem>>, %arg9: memref<1x256xf32, #tpu.memory_space<vmem>>, %arg10: memref<1x256xf32, #tpu.memory_space<vmem>>, %arg11: memref<1x1xf32, #tpu.memory_space<vmem>>, %arg12: memref<8x1xf32, #tpu.memory_space<vmem>>) attributes {dimension_semantics = [#tpu.dimension_semantics<parallel>], iteration_bounds = array<i64: 1>, scalar_prefetch = 0 : i64, scratch_operands = 0 : i64, tpu.core_type = #tpu.core_type<tc>, window_params = [{transform_indices = @transform_0, window_bounds = array<i64: 8, 32>}, {transform_indices = @transform_1, window_bounds = array<i64: 8, 1>}, {pipeline_mode = #tpu.pipeline_mode<synchronous>, transform_indices = @transform_2, window_bounds = array<i64: 32, 128>}, {pipeline_mode = #tpu.pipeline_mode<synchronous>, transform_indices = @transform_3, window_bounds = array<i64: 1, 128>}, {pipeline_mode = #tpu.pipeline_mode<synchronous>, transform_indices = @transform_4, window_bounds = array<i64: 128, 128>}, {pipeline_mode = #tpu.pipeline_mode<synchronous>, transform_indices = @transform_5, window_bounds = array<i64: 1, 128>}, {pipeline_mode = #tpu.pipeline_mode<synchronous>, transform_indices = @transform_6, window_bounds = array<i64: 1, 128>}, {pipeline_mode = #tpu.pipeline_mode<synchronous>, transform_indices = @transform_7, window_bounds = array<i64: 128, 256>}, {pipeline_mode = #tpu.pipeline_mode<synchronous>, transform_indices = @transform_8, window_bounds = array<i64: 1, 256>}, {pipeline_mode = #tpu.pipeline_mode<synchronous>, transform_indices = @transform_9, window_bounds = array<i64: 1, 256>}, {pipeline_mode = #tpu.pipeline_mode<synchronous>, transform_indices = @transform_10, window_bounds = array<i64: 1, 1>}, {transform_indices = @transform_11, window_bounds = array<i64: 8, 1>}]} {
    %c0 = arith.constant 0 : index
    %c0_0 = arith.constant 0 : index
    %0 = vector.load %arg1[%c0, %c0_0] : memref<8x32xf32, #tpu.memory_space<vmem>>, vector<8x32xf32>
    %c0_1 = arith.constant 0 : index
    %c0_2 = arith.constant 0 : index
    %1 = vector.load %arg3[%c0_1, %c0_2] : memref<32x128xf32, #tpu.memory_space<vmem>>, vector<32x128xf32>
    %cst = arith.constant dense<0.000000e+00> : vector<8x128xf32>
    %2 = tpu.matmul %0, %1, %cst {dimension_numbers = #tpu.dot_dimension_numbers<[1], [0], [0], [1], [0, 0, 1, 1], [], []>} : vector<8x32xf32>, vector<32x128xf32>, vector<8x128xf32> -> vector<8x128xf32>
    %c0_3 = arith.constant 0 : index
    %c0_4 = arith.constant 0 : index
    %3 = vector.load %arg4[%c0_3, %c0_4] : memref<1x128xf32, #tpu.memory_space<vmem>>, vector<1x128xf32>
    %4 = vector.broadcast %3 : vector<1x128xf32> to vector<8x128xf32>
    %5 = arith.addf %2, %4 : vector<8x128xf32>
    %cst_5 = arith.constant 0.000000e+00 : f32
    %6 = vector.broadcast %cst_5 : f32 to vector<8x128xf32>
    %7 = arith.maximumf %5, %6 : vector<8x128xf32>
    %c0_6 = arith.constant 0 : index
    %c0_7 = arith.constant 0 : index
    %8 = vector.load %arg5[%c0_6, %c0_7] : memref<128x128xf32, #tpu.memory_space<vmem>>, vector<128x128xf32>
    %cst_8 = arith.constant dense<0.000000e+00> : vector<8x128xf32>
    %9 = tpu.matmul %7, %8, %cst_8 {dimension_numbers = #tpu.dot_dimension_numbers<[1], [0], [0], [1], [0, 0, 1, 1], [], []>} : vector<8x128xf32>, vector<128x128xf32>, vector<8x128xf32> -> vector<8x128xf32>
    %c0_9 = arith.constant 0 : index
    %c0_10 = arith.constant 0 : index
    %10 = vector.load %arg2[%c0_9, %c0_10] : memref<8x1xf32, #tpu.memory_space<vmem>>, vector<8x1xf32>
    %c0_11 = arith.constant 0 : index
    %c0_12 = arith.constant 0 : index
    %11 = vector.load %arg6[%c0_11, %c0_12] : memref<1x128xf32, #tpu.memory_space<vmem>>, vector<1x128xf32>
    %12 = vector.broadcast %10 : vector<8x1xf32> to vector<8x128xf32>
    %13 = vector.broadcast %11 : vector<1x128xf32> to vector<8x128xf32>
    %14 = arith.mulf %12, %13 : vector<8x128xf32>
    %15 = arith.addf %9, %14 : vector<8x128xf32>
    %c0_13 = arith.constant 0 : index
    %c0_14 = arith.constant 0 : index
    %16 = vector.load %arg7[%c0_13, %c0_14] : memref<1x128xf32, #tpu.memory_space<vmem>>, vector<1x128xf32>
    %17 = vector.broadcast %16 : vector<1x128xf32> to vector<8x128xf32>
    %18 = arith.addf %15, %17 : vector<8x128xf32>
    %cst_15 = arith.constant 0.000000e+00 : f32
    %19 = vector.broadcast %cst_15 : f32 to vector<8x128xf32>
    %20 = arith.maximumf %18, %19 : vector<8x128xf32>
    %c0_16 = arith.constant 0 : index
    %c0_17 = arith.constant 0 : index
    %21 = vector.load %arg8[%c0_16, %c0_17] : memref<128x256xf32, #tpu.memory_space<vmem>>, vector<128x256xf32>
    %cst_18 = arith.constant dense<0.000000e+00> : vector<8x256xf32>
    %22 = tpu.matmul %20, %21, %cst_18 {dimension_numbers = #tpu.dot_dimension_numbers<[1], [0], [0], [1], [0, 0, 1, 1], [], []>} : vector<8x128xf32>, vector<128x256xf32>, vector<8x256xf32> -> vector<8x256xf32>
    %c0_19 = arith.constant 0 : index
    %c0_20 = arith.constant 0 : index
    %23 = vector.load %arg9[%c0_19, %c0_20] : memref<1x256xf32, #tpu.memory_space<vmem>>, vector<1x256xf32>
    %24 = vector.broadcast %23 : vector<1x256xf32> to vector<8x256xf32>
    %25 = arith.addf %22, %24 : vector<8x256xf32>
    %cst_21 = arith.constant 0.000000e+00 : f32
    %26 = vector.broadcast %cst_21 : f32 to vector<8x256xf32>
    %27 = arith.maximumf %25, %26 : vector<8x256xf32>
    %c0_22 = arith.constant 0 : index
    %c0_23 = arith.constant 0 : index
    %28 = vector.load %arg10[%c0_22, %c0_23] : memref<1x256xf32, #tpu.memory_space<vmem>>, vector<1x256xf32>
    %29 = vector.broadcast %28 : vector<1x256xf32> to vector<8x256xf32>
    %30 = arith.mulf %27, %29 : vector<8x256xf32>
    %cst_24 = arith.constant dense<0.000000e+00> : vector<8xf32>
    %31 = vector.multi_reduction <add>, %30, %cst_24 [1] : vector<8x256xf32> to vector<8xf32>
    %32 = vector.shape_cast %31 : vector<8xf32> to vector<8x1xf32>
    %c0_25 = arith.constant 0 : index
    %c0_26 = arith.constant 0 : index
    %33 = vector.load %arg11[%c0_25, %c0_26] : memref<1x1xf32, #tpu.memory_space<vmem>>, vector<1x1xf32>
    %34 = vector.broadcast %33 : vector<1x1xf32> to vector<8x1xf32>
    %35 = arith.addf %32, %34 : vector<8x1xf32>
    %c0_27 = arith.constant 0 : index
    %c0_28 = arith.constant 0 : index
    %36 = vector.load %arg12[%c0_27, %c0_28] : memref<8x1xf32, #tpu.memory_space<vmem>>, vector<8x1xf32>
    tpu.vector_store %arg12[%c0_27, %c0_28], %35 {strides = array<i32>} : memref<8x1xf32, #tpu.memory_space<vmem>>, vector<8x1xf32>,
    return
  }
  func.func @transform_0(%arg0: i32) -> (i32, i32) {
    %c0_i32 = arith.constant 0 : i32
    %c0_i32_0 = arith.constant 0 : i32
    return %arg0, %c0_i32 : i32, i32
  }
  func.func @transform_1(%arg0: i32) -> (i32, i32) {
    %c0_i32 = arith.constant 0 : i32
    %c0_i32_0 = arith.constant 0 : i32
    return %arg0, %c0_i32 : i32, i32
  }
  func.func @transform_2(%arg0: i32) -> (i32, i32) {
    %c0_i32 = arith.constant 0 : i32
    %c0_i32_0 = arith.constant 0 : i32
    %c0_i32_1 = arith.constant 0 : i32
    return %c0_i32, %c0_i32_0 : i32, i32
  }
  func.func @transform_3(%arg0: i32) -> (i32, i32) {
    %c0_i32 = arith.constant 0 : i32
    %c0_i32_0 = arith.constant 0 : i32
    %c0_i32_1 = arith.constant 0 : i32
    return %c0_i32, %c0_i32_0 : i32, i32
  }
  func.func @transform_4(%arg0: i32) -> (i32, i32) {
    %c0_i32 = arith.constant 0 : i32
    %c0_i32_0 = arith.constant 0 : i32
    %c0_i32_1 = arith.constant 0 : i32
    return %c0_i32, %c0_i32_0 : i32, i32
  }
  func.func @transform_5(%arg0: i32) -> (i32, i32) {
    %c0_i32 = arith.constant 0 : i32
    %c0_i32_0 = arith.constant 0 : i32
    %c0_i32_1 = arith.constant 0 : i32
    return %c0_i32, %c0_i32_0 : i32, i32
  }
  func.func @transform_6(%arg0: i32) -> (i32, i32) {
    %c0_i32 = arith.constant 0 : i32
    %c0_i32_0 = arith.constant 0 : i32
    %c0_i32_1 = arith.constant 0 : i32
    return %c0_i32, %c0_i32_0 : i32, i32
  }
  func.func @transform_7(%arg0: i32) -> (i32, i32) {
    %c0_i32 = arith.constant 0 : i32
    %c0_i32_0 = arith.constant 0 : i32
    %c0_i32_1 = arith.constant 0 : i32
    return %c0_i32, %c0_i32_0 : i32, i32
  }
  func.func @transform_8(%arg0: i32) -> (i32, i32) {
    %c0_i32 = arith.constant 0 : i32
    %c0_i32_0 = arith.constant 0 : i32
    %c0_i32_1 = arith.constant 0 : i32
    return %c0_i32, %c0_i32_0 : i32, i32
  }
  func.func @transform_9(%arg0: i32) -> (i32, i32) {
    %c0_i32 = arith.constant 0 : i32
    %c0_i32_0 = arith.constant 0 : i32
    %c0_i32_1 = arith.constant 0 : i32
    return %c0_i32, %c0_i32_0 : i32, i32
  }
  func.func @transform_10(%arg0: i32) -> (i32, i32) {
    %c0_i32 = arith.constant 0 : i32
    %c0_i32_0 = arith.constant 0 : i32
    %c0_i32_1 = arith.constant 0 : i32
    return %c0_i32, %c0_i32_0 : i32, i32
  }
  func.func @transform_11(%arg0: i32) -> (i32, i32) {
    %c0_i32 = arith.constant 0 : i32
    %c0_i32_0 = arith.constant 0 : i32
    return %arg0, %c0_i32 : i32, i32
  }
}

</mosaic_0001>

<llo_original>
// kernel: tpu_custom_call.1
$region0: #{tpu_custom_call.1}
  #allocation0 [shape = 'u32[]', space=smem, size = 0x4, offset = 0x4, fixed_abs, tag = 'smem constant byte address 0x4 - core index']
  #allocation1 [shape = 'u32[72,128]{1,0:T(1,128)}', space=vmem, size = 0x9000, scoped, tag = 'internal scratch']
  #allocation2 [shape = 'f32[1,1]{1,0:T(1,128)S(1)}', space=vmem, size = 0x200, scoped, tag = 'scoped memory for tpu_custom_call.1']
  %s0 = inlined_call_operand.vmem [shape: f32[8,32], index: 0, kind: input, shape index: {}]
  %s1 = inlined_call_operand.vmem [shape: f32[8,1], index: 1, kind: input, shape index: {}]
  %s2 = inlined_call_operand.hbm [shape: f32[32,128], index: 2, kind: input, shape index: {}]
  %s3 = inlined_call_operand.vmem [shape: f32[1,128], index: 3, kind: input, shape index: {}]
  %s4 = inlined_call_operand.hbm [shape: f32[128,128], index: 4, kind: input, shape index: {}]
  %s5 = inlined_call_operand.vmem [shape: f32[1,128], index: 5, kind: input, shape index: {}]
  %s6 = inlined_call_operand.vmem [shape: f32[1,128], index: 6, kind: input, shape index: {}]
  %s7 = inlined_call_operand.hbm [shape: f32[128,256], index: 7, kind: input, shape index: {}]
  %s8 = inlined_call_operand.vmem [shape: f32[1,256], index: 8, kind: input, shape index: {}]
  %s9 = inlined_call_operand.vmem [shape: f32[1,256], index: 9, kind: input, shape index: {}]
  %s10 = inlined_call_operand.<no memory space> [shape: f32[1,1], index: 10, kind: input, shape index: {}]
  %s11 = inlined_call_operand.vmem [shape: f32[8,1], index: 11, kind: output, shape index: {}]
  %s12 = sld [smem:[#allocation0]]
  $region66: #{tpu_custom_call.1} parent=0
    _
  %s14 = ssub.s32 1, %s12
  %s15 = scalar_select 0, %s14, %s12
  %v16 = vstv %s10
  %17 = vst [vmem:[#allocation2] sm:$0x1] %v16
  $region1: #{tpu_custom_call.1} parent=0
    #allocation3 [shape = 'u8[16384]{0}', space=vmem, size = 0x4000, scoped, tag = 'input window, operand 2, single buffered']
    #allocation4 [shape = 's32[1]{0}', space=sflag, size = 0x4, scoped, tag = 'scoped memory for tpu_custom_call.1']
    #allocation5 [shape = 'u8[65536]{0}', space=vmem, size = 0x10000, scoped, tag = 'input window, operand 4, single buffered']
    #allocation6 [shape = 's32[1]{0}', space=sflag, size = 0x4, scoped, tag = 'scoped memory for tpu_custom_call.1']
    #allocation7 [shape = 'u8[131072]{0}', space=vmem, size = 0x20000, scoped, tag = 'input window, operand 7, single buffered']
    %18 = vsyncpa [#allocation4], 0
    %19 = vsyncpa [#allocation6], 0
    // Predicated region
    $region2: #{tpu_custom_call.1} parent=1 // pred_check
      _
    $region3: #{tpu_custom_call.1} parent=1 // pred_check_branch
      %21 = sbr.rel (0) target = $region5
    $region4: #{tpu_custom_call.1} parent=1 // pred_region
      _
    $region5: #{tpu_custom_call.1} parent=1 // pred_fallthru
      _
    // Predicated region
    $region6: #{tpu_custom_call.1} parent=1 // pred_check
      _
    $region7: #{tpu_custom_call.1} parent=1 // pred_check_branch
      %23 = sbr.rel (0) target = $region9
    $region8: #{tpu_custom_call.1} parent=1 // pred_region
      _
    $region9: #{tpu_custom_call.1} parent=1 // pred_fallthru
      _
    // Predicated region
    $region10: #{tpu_custom_call.1} parent=1 // pred_check
      _
    $region11: #{tpu_custom_call.1} parent=1 // pred_check_branch
      %25 = sbr.rel (0) target = $region13
    $region12: #{tpu_custom_call.1} parent=1 // pred_region
      %27 = vsyncadd [#allocation4], 0
      %s28 = sshll.u32 %s2, 4
      %s29 = int_to_ptr.hbm [resolvable:$true] %s28
      %s30 = sshll.u32 [#allocation3], 4
      %s31 = int_to_ptr.vmem [resolvable:$true] %s30
      %36 = dma.hbm_to_vmem [thread:$0]  %s29, 512, %s31, [#allocation4], 128, 128, 8
    $region13: #{tpu_custom_call.1} parent=1 // pred_fallthru
      _
    // Predicated region
    $region14: #{tpu_custom_call.1} parent=1 // pred_check
      _
    $region15: #{tpu_custom_call.1} parent=1 // pred_check_branch
      %38 = sbr.rel (0) target = $region17
    $region16: #{tpu_custom_call.1} parent=1 // pred_region
      _
    $region17: #{tpu_custom_call.1} parent=1 // pred_fallthru
      _
    // Predicated region
    $region18: #{tpu_custom_call.1} parent=1 // pred_check
      _
    $region19: #{tpu_custom_call.1} parent=1 // pred_check_branch
      %40 = sbr.rel (0) target = $region21
    $region20: #{tpu_custom_call.1} parent=1 // pred_region
      %42 = vsyncadd [#allocation6], 0
      %s43 = sshll.u32 %s4, 4
      %s44 = int_to_ptr.hbm [resolvable:$true] %s43
      %s45 = sshll.u32 [#allocation5], 4
      %s46 = int_to_ptr.vmem [resolvable:$true] %s45
      %51 = dma.hbm_to_vmem [thread:$0]  %s44, 2048, %s46, [#allocation6], 128, 128, 8
    $region21: #{tpu_custom_call.1} parent=1 // pred_fallthru
      _
    // Predicated region
    $region22: #{tpu_custom_call.1} parent=1 // pred_check
      _
    $region23: #{tpu_custom_call.1} parent=1 // pred_check_branch
      %53 = sbr.rel (0) target = $region25
    $region24: #{tpu_custom_call.1} parent=1 // pred_region
      _
    $region25: #{tpu_custom_call.1} parent=1 // pred_fallthru
      _
    // Predicated region
    $region26: #{tpu_custom_call.1} parent=1 // pred_check
      _
    $region27: #{tpu_custom_call.1} parent=1 // pred_check_branch
      %55 = sbr.rel (0) target = $region29
    $region28: #{tpu_custom_call.1} parent=1 // pred_region
      _
    $region29: #{tpu_custom_call.1} parent=1 // pred_fallthru
      _
    // Predicated region
    $region30: #{tpu_custom_call.1} parent=1 // pred_check
      _
    $region31: #{tpu_custom_call.1} parent=1 // pred_check_branch
      %57 = sbr.rel (0) target = $region33
    $region32: #{tpu_custom_call.1} parent=1 // pred_region
      %59 = vsyncadd [#allocation6], 0
      %s60 = sshll.u32 %s7, 4
      %s61 = int_to_ptr.hbm [resolvable:$true] %s60
      %s62 = sshll.u32 [#allocation7], 4
      %s63 = int_to_ptr.vmem [resolvable:$true] %s62
      %68 = dma.hbm_to_vmem [thread:$0]  %s61, 4096, %s63, [#allocation6], 256, 256, 16
    $region33: #{tpu_custom_call.1} parent=1 // pred_fallthru
      _
    // Predicated region
    $region34: #{tpu_custom_call.1} parent=1 // pred_check
      _
    $region35: #{tpu_custom_call.1} parent=1 // pred_check_branch
      %70 = sbr.rel (0) target = $region37
    $region36: #{tpu_custom_call.1} parent=1 // pred_region
      _
    $region37: #{tpu_custom_call.1} parent=1 // pred_fallthru
      _
    // Predicated region
    $region38: #{tpu_custom_call.1} parent=1 // pred_check
      _
    $region39: #{tpu_custom_call.1} parent=1 // pred_check_branch
      %72 = sbr.rel (0) target = $region41
    $region40: #{tpu_custom_call.1} parent=1 // pred_region
      _
    $region41: #{tpu_custom_call.1} parent=1 // pred_fallthru
      _
    // Predicated region
    $region42: #{tpu_custom_call.1} parent=1 // pred_check
      _
    $region43: #{tpu_custom_call.1} parent=1 // pred_check_branch
      %74 = sbr.rel (0) target = $region45
    $region44: #{tpu_custom_call.1} parent=1 // pred_region
      _
    $region45: #{tpu_custom_call.1} parent=1 // pred_fallthru
      _
    // Predicated region
    $region46: #{tpu_custom_call.1} parent=1 // pred_check
      _
    $region47: #{tpu_custom_call.1} parent=1 // pred_check_branch
      %76 = sbr.rel (0) target = $region49
    $region48: #{tpu_custom_call.1} parent=1 // pred_region
      %78 = dma.done [#allocation4], 512
    $region49: #{tpu_custom_call.1} parent=1 // pred_fallthru
      _
    // Predicated region
    $region50: #{tpu_custom_call.1} parent=1 // pred_check
      _
    $region51: #{tpu_custom_call.1} parent=1 // pred_check_branch
      %80 = sbr.rel (0) target = $region53
    $region52: #{tpu_custom_call.1} parent=1 // pred_region
      %82 = dma.done [#allocation6], 2048
    $region53: #{tpu_custom_call.1} parent=1 // pred_fallthru
      _
    // Predicated region
    $region54: #{tpu_custom_call.1} parent=1 // pred_check
      _
    $region55: #{tpu_custom_call.1} parent=1 // pred_check_branch
      %84 = sbr.rel (0) target = $region57
    $region56: #{tpu_custom_call.1} parent=1 // pred_region
      %86 = dma.done [#allocation6], 4096
    $region57: #{tpu_custom_call.1} parent=1 // pred_fallthru
      _
    %v87 = vld [vmem:[%s0] sm:$0xff]
    %v88 = vld [vmem:[#allocation3] sm:$0xff]
    %v89 = vld [vmem:[#allocation3 + $0x8] sm:$0xff]
    %v90 = vld [vmem:[#allocation3 + $0x10] sm:$0xff]
    %v91 = vld [vmem:[#allocation3 + $0x18] sm:$0xff]
    %v92 = vld [vmem:[%s3] sm:$0x1]
    %v94 = vperm.slane %v92, 0
    %vm96 = vcmask 261120
    %v98 = vsel %vm96, %v87, 0
    %100 = vmatpush.msra.mxu0 0.0
    %101 = vmatpush.msra.mxu0 0.0
    %102 = vmatpush.msra.mxu0 0.0
    %103 = vmatpush.msra.mxu0 0.0
    %104 = vmatpush.msra.mxu0 0.0
    %105 = vmatpush.msra.mxu0 0.0
    %106 = vmatpush.msra.mxu0 0.0
    %107 = vmatpush.msra.mxu0 0.0
    %108 = vmatpush.msra.mxu0 0.0
    %109 = vmatpush.msra.mxu0 0.0
    %110 = vmatpush.msra.mxu0 0.0
    %111 = vmatpush.msra.mxu0 0.0
    %112 = vmatpush.msra.mxu0 %v91
    %113 = vmatpush.msra.mxu0 %v90
    %114 = vmatpush.msra.mxu0 %v89
    %115 = vmatpush.msra.mxu0 %v88
    %116 = vmatmul.f32.gmra.mxu0 %v98
    %v117 = vpop.f32.mrf.mxu0
    %v118 = vadd.f32 %v94, %v117
    %119 = vdwg.mxu0
    %v120 = vmax.f32 %v118, 0.0
    %v121 = vld [vmem:[#allocation5] sm:$0xff]
    %v122 = vld [vmem:[#allocation5 + $0x8] sm:$0xff]
    %v123 = vld [vmem:[#allocation5 + $0x10] sm:$0xff]
    %v124 = vld [vmem:[#allocation5 + $0x18] sm:$0xff]
    %v125 = vld [vmem:[#allocation5 + $0x20] sm:$0xff]
    %v126 = vld [vmem:[#allocation5 + $0x28] sm:$0xff]
    %v127 = vld [vmem:[#allocation5 + $0x30] sm:$0xff]
    %v128 = vld [vmem:[#allocation5 + $0x38] sm:$0xff]
    %v129 = vld [vmem:[#allocation5 + $0x40] sm:$0xff]
    %v130 = vld [vmem:[#allocation5 + $0x48] sm:$0xff]
    %v131 = vld [vmem:[#allocation5 + $0x50] sm:$0xff]
    %v132 = vld [vmem:[#allocation5 + $0x58] sm:$0xff]
    %v133 = vld [vmem:[#allocation5 + $0x60] sm:$0xff]
    %v134 = vld [vmem:[#allocation5 + $0x68] sm:$0xff]
    %v135 = vld [vmem:[#allocation5 + $0x70] sm:$0xff]
    %v136 = vld [vmem:[#allocation5 + $0x78] sm:$0xff]
    %v137 = vld [vmem:[%s1] sm:$0xff]
    %v138 = vld [vmem:[%s5] sm:$0x1]
    %140 = vset.pattern.permute.xlu0 0
    %141 = vperm.xlu0 %140, %v137
    %v142 = vpop.permute.xlu0 %141
    %v145 = vperm.slane %v138, 0
    %v147 = vmul.f32 %v142, %v145
    %148 = vmatpush.msra.mxu0 %v136
    %149 = vmatpush.msra.mxu0 %v135
    %150 = vmatpush.msra.mxu0 %v134
    %151 = vmatpush.msra.mxu0 %v133
    %152 = vmatpush.msra.mxu0 %v132
    %153 = vmatpush.msra.mxu0 %v131
    %154 = vmatpush.msra.mxu0 %v130
    %155 = vmatpush.msra.mxu0 %v129
    %156 = vmatpush.msra.mxu0 %v128
    %157 = vmatpush.msra.mxu0 %v127
    %158 = vmatpush.msra.mxu0 %v126
    %159 = vmatpush.msra.mxu0 %v125
    %160 = vmatpush.msra.mxu0 %v124
    %161 = vmatpush.msra.mxu0 %v123
    %162 = vmatpush.msra.mxu0 %v122
    %163 = vmatpush.msra.mxu0 %v121
    %164 = vmatmul.f32.gmra.mxu0 %v120
    %v165 = vpop.f32.mrf.mxu0
    %v166 = vadd.f32 %v147, %v165
    %167 = vdwg.mxu0
    %v168 = vld [vmem:[%s6] sm:$0x1]
    %v170 = vperm.slane %v168, 0
    %v172 = vadd.f32 %v166, %v170
    %v173 = vmax.f32 %v172, 0.0
    %v174 = vld [vmem:[#allocation7] sm:$0xff]
    %v175 = vld [vmem:[#allocation7 + $0x8] sm:$0xff]
    %v176 = vld [vmem:[#allocation7 + $0x10] sm:$0xff]
    %v177 = vld [vmem:[#allocation7 + $0x18] sm:$0xff]
    %v178 = vld [vmem:[#allocation7 + $0x20] sm:$0xff]
    %v179 = vld [vmem:[#allocation7 + $0x28] sm:$0xff]
    %v180 = vld [vmem:[#allocation7 + $0x30] sm:$0xff]
    %v181 = vld [vmem:[#allocation7 + $0x38] sm:$0xff]
    %v182 = vld [vmem:[#allocation7 + $0x40] sm:$0xff]
    %v183 = vld [vmem:[#allocation7 + $0x48] sm:$0xff]
    %v184 = vld [vmem:[#allocation7 + $0x50] sm:$0xff]
    %v185 = vld [vmem:[#allocation7 + $0x58] sm:$0xff]
    %v186 = vld [vmem:[#allocation7 + $0x60] sm:$0xff]
    %v187 = vld [vmem:[#allocation7 + $0x68] sm:$0xff]
    %v188 = vld [vmem:[#allocation7 + $0x70] sm:$0xff]
    %v189 = vld [vmem:[#allocation7 + $0x78] sm:$0xff]
    %v190 = vld [vmem:[#allocation7 + $0x80] sm:$0xff]
    %v191 = vld [vmem:[#allocation7 + $0x88] sm:$0xff]
    %v192 = vld [vmem:[#allocation7 + $0x90] sm:$0xff]
    %v193 = vld [vmem:[#allocation7 + $0x98] sm:$0xff]
    %v194 = vld [vmem:[#allocation7 + $0xa0] sm:$0xff]
    %v195 = vld [vmem:[#allocation7 + $0xa8] sm:$0xff]
    %v196 = vld [vmem:[#allocation7 + $0xb0] sm:$0xff]
    %v197 = vld [vmem:[#allocation7 + $0xb8] sm:$0xff]
    %v198 = vld [vmem:[#allocation7 + $0xc0] sm:$0xff]
    %v199 = vld [vmem:[#allocation7 + $0xc8] sm:$0xff]
    %v200 = vld [vmem:[#allocation7 + $0xd0] sm:$0xff]
    %v201 = vld [vmem:[#allocation7 + $0xd8] sm:$0xff]
    %v202 = vld [vmem:[#allocation7 + $0xe0] sm:$0xff]
    %v203 = vld [vmem:[#allocation7 + $0xe8] sm:$0xff]
    %v204 = vld [vmem:[#allocation7 + $0xf0] sm:$0xff]
    %v205 = vld [vmem:[#allocation7 + $0xf8] sm:$0xff]
    %v206 = vld [vmem:[%s8] sm:$0x3]
    %v208 = vperm.slane %v206, 0
    %v209 = vperm.slane %v206, 1
    %212 = vmatpush.msra.mxu0 %v204
    %213 = vmatpush.msra.mxu0 %v202
    %214 = vmatpush.msra.mxu0 %v200
    %215 = vmatpush.msra.mxu0 %v198
    %216 = vmatpush.msra.mxu0 %v196
    %217 = vmatpush.msra.mxu0 %v194
    %218 = vmatpush.msra.mxu0 %v192
    %219 = vmatpush.msra.mxu0 %v190
    %220 = vmatpush.msra.mxu0 %v188
    %221 = vmatpush.msra.mxu0 %v186
    %222 = vmatpush.msra.mxu0 %v184
    %223 = vmatpush.msra.mxu0 %v182
    %224 = vmatpush.msra.mxu0 %v180
    %225 = vmatpush.msra.mxu0 %v178
    %226 = vmatpush.msra.mxu0 %v176
    %227 = vmatpush.msra.mxu0 %v174
    %228 = vmatmul.f32.gmra.mxu0 %v173
    %v229 = vpop.f32.mrf.mxu0
    %v230 = vadd.f32 %v208, %v229
    %231 = vdwg.mxu0
    %232 = vmatpush.msra.mxu0 %v205
    %233 = vmatpush.msra.mxu0 %v203
    %234 = vmatpush.msra.mxu0 %v201
    %235 = vmatpush.msra.mxu0 %v199
    %236 = vmatpush.msra.mxu0 %v197
    %237 = vmatpush.msra.mxu0 %v195
    %238 = vmatpush.msra.mxu0 %v193
    %239 = vmatpush.msra.mxu0 %v191
    %240 = vmatpush.msra.mxu0 %v189
    %241 = vmatpush.msra.mxu0 %v187
    %242 = vmatpush.msra.mxu0 %v185
    %243 = vmatpush.msra.mxu0 %v183
    %244 = vmatpush.msra.mxu0 %v181
    %245 = vmatpush.msra.mxu0 %v179
    %246 = vmatpush.msra.mxu0 %v177
    %247 = vmatpush.msra.mxu0 %v175
    %248 = vmatmul.f32.gmra.mxu0 %v173
    %v249 = vpop.f32.mrf.mxu0
    %v250 = vadd.f32 %v209, %v249
    %251 = vdwg.mxu0
    %v252 = vmax.f32 %v230, 0.0
    %v253 = vmax.f32 %v250, 0.0
    %v254 = vld [vmem:[%s9] sm:$0x3]
    %v256 = vperm.slane %v254, 0
    %v257 = vperm.slane %v254, 1
    %v260 = vmul.f32 %v252, %v256
    %v261 = vmul.f32 %v253, %v257
    %v262 = vadd.f32 %v260, %v261
    %263 = vadd.xlane.f32.xlu0 %v262
    %v264 = vpop.xlane.xlu0 %263
    %v265 = vld [vmem:[#allocation2] sm:$0x1]
    %v267 = vperm.slane %v265, 0
    %v269 = vadd.f32 %v264, %v267
    %vm270 = vcmask 7168
    %271 = vst.msk [vmem:[%s11] sm:$0xff] %vm270, %v269
    // Predicated region
    $region58: #{tpu_custom_call.1} parent=1 // pred_check
      _
    $region59: #{tpu_custom_call.1} parent=1 // pred_check_branch
      %273 = sbr.rel (0) target = $region61
    $region60: #{tpu_custom_call.1} parent=1 // pred_region
      _
    $region61: #{tpu_custom_call.1} parent=1 // pred_fallthru
      _
    // Predicated region
    $region62: #{tpu_custom_call.1} parent=1 // pred_check
      _
    $region63: #{tpu_custom_call.1} parent=1 // pred_check_branch
      %275 = sbr.rel (0) target = $region65
    $region64: #{tpu_custom_call.1} parent=1 // pred_region
      _
    $region65: #{tpu_custom_call.1} parent=1 // pred_fallthru
      _
    %276 = vsyncpa [#allocation4], 1
    %277 = vsyncpa [#allocation6], 1

</llo_original>
